<compile_context>
chip_gen: v7x
topology: tpu7x:2x2x1
jax: 0.10.0
libtpu: 0.0.40
codegen_flags: <defaults>
</compile_context>

<pallas_src>
import functools

import jax
import jax.numpy as jnp
from jax.experimental import pallas as pl
from jax.experimental.pallas import tpu as pltpu

_SQRT_2_OVER_PI = 0.7978845608028654


def _round_up(n, m):
    return ((n + m - 1) // m) * m


def _cdiv(a, b):
    return -(-a // b)


def _gelu(x):
    # tanh-form GELU: the tanh goes to the EUP slot (VALU-friendly vs. erf polynomial).
    return 0.5 * x * (1.0 + jnp.tanh(_SQRT_2_OVER_PI * (x + 0.044715 * x * x * x)))


def _gelu_compute_dtype():
    """bf16 GELU math on chips with a bf16 VPU/EUP (v6e/v7x); f32 on v5e and older."""
    try:
        kind = jax.devices()[0].device_kind.lower()
    except Exception:  # pragma: no cover - defensive
        return jnp.float32
    if any(t in kind for t in ("v2", "v3", "v4", "v5")):
        return jnp.float32
    return jnp.bfloat16


# ----------------------------------------------------------------------------- kernel


def actor_critic_kernel(
    x_ref,                                   # (TB, DI)        bf16, batch tile
    w_in_ref,                                # (DI, Hp)        bf16
    w_p1_ref,                                # (Hp, Hp)        bf16, pi hidden layer
    w_h1_ref,                                # (Hp, 2*Hp)      bf16, (w_p2 folded) fused head layer 1
    w_out_ref,                               # (2*Hp, OUTp)    bf16, block-diag head layer 2
    b_ref,                                   # (1, 4*Hp+OUTp)  f32, all biases packed
    out_ref,                                 # (TB, OUTp)      bf16, [logits | value | pad]
    *, h_pad, out_pad, dim_action, idx_log_std, continuous_actions, act_dtype,
):
    Hp = h_pad
    b_in = b_ref[:, 0:Hp]
    b_p1 = b_ref[:, Hp:2 * Hp]
    b_h1 = b_ref[:, 2 * Hp:4 * Hp]
    b_out = b_ref[:, 4 * Hp:4 * Hp + out_pad]

    def lin(x, w_ref, b):
        # bf16 x bf16 MXU matmul, f32 accumulation, f32 bias add.
        return jnp.dot(x, w_ref[...], preferred_element_type=jnp.float32) + b

    def act(t):
        # GELU math in bf16 on bf16-VPU chips (half the VALU/EUP work), f32 otherwise.
        return _gelu(t.astype(act_dtype)).astype(jnp.bfloat16)

    x = x_ref[...]
    # input(): input_pi = gelu(input_layer_pi(x)); share_layers=True -> embd_vf = embd_pi
    h = act(lin(x, w_in_ref, b_in))
    # pi backbone first layer: Linear -> GELU
    h = act(lin(h, w_p1_ref, b_p1))
    # pi backbone second layer (activation-free) is pre-folded into the fused head layer 1:
    # hv = gelu((h @ W_p2 + b_p2) @ [W_a1|W_v1] + [b_a1|b_v1]) == gelu(h @ W_h1 + b_h1)
    hv = act(lin(h, w_h1_ref, b_h1))
    # fused block-diagonal second head layers -> lane-dense slab: [:A]=logits, [A]=value
    out = lin(hv, w_out_ref, b_out)

    if continuous_actions:
        col = jax.lax.broadcasted_iota(jnp.int32, out.shape, 1)
        clamp = (col >= idx_log_std) & (col < dim_action)
        out = jnp.where(clamp, jnp.clip(out, -1.0, 1.0), out)

    out_ref[...] = out.astype(out_ref.dtype)


# --------------------------------------------------------------------- params & packing


def init_params(key, dim_input, dim_hidden, dim_action, std=0.02):
    shapes = {
        "w_in": (dim_input, dim_hidden), "b_in": (1, dim_hidden),
        "w_p1": (dim_hidden, dim_hidden), "b_p1": (1, dim_hidden),
        "w_p2": (dim_hidden, dim_hidden), "b_p2": (1, dim_hidden),
        "w_a1": (dim_hidden, dim_hidden), "b_a1": (1, dim_hidden),
        "w_a2": (dim_hidden, dim_action), "b_a2": (1, dim_action),
        "w_v1": (dim_hidden, dim_hidden), "b_v1": (1, dim_hidden),
        "w_v2": (dim_hidden, 1), "b_v2": (1, 1),
    }
    keys = jax.random.split(key, len(shapes))
    params = {}
    for k, (name, shp) in zip(keys, shapes.items()):
        if name.startswith("w"):
            params[name] = (std * jax.random.normal(k, shp)).astype(jnp.float32)
        else:
            params[name] = jnp.zeros(shp, dtype=jnp.float32)
    return params


def pack_params(params, dim_input, dim_hidden, dim_action, h_pad, out_pad):
    """Zero-pad hidden dim to h_pad lanes, fold w_p2 into the fused heads, pack biases."""
    H, Hp, A = dim_hidden, h_pad, dim_action

    def padw(w, rows, cols):
        z = jnp.zeros((rows, cols), jnp.float32)
        return z.at[:w.shape[0], :w.shape[1]].set(w)

    def padb(b, cols):
        z = jnp.zeros((1, cols), jnp.float32)
        return z.at[:, :b.shape[1]].set(b)

    w_in = padw(params["w_in"], dim_input, Hp)
    w_p1 = padw(params["w_p1"], Hp, Hp)

    # head layer 1: columns [0:Hp] action branch, [Hp:2Hp] value branch
    w_av1 = jnp.concatenate(
        [padw(params["w_a1"], Hp, Hp), padw(params["w_v1"], Hp, Hp)], axis=1)
    b_av1 = jnp.concatenate(
        [padb(params["b_a1"], Hp), padb(params["b_v1"], Hp)], axis=1)
    # fold the activation-free pi output layer (w_p2, b_p2) into the head layer-1 matmul
    w_p2 = padw(params["w_p2"], Hp, Hp)
    b_p2 = padb(params["b_p2"], Hp)
    w_h1 = w_p2 @ w_av1                   # (Hp, 2Hp), f32 precompute, cast to bf16 below
    b_h1 = b_p2 @ w_av1 + b_av1           # (1, 2Hp)

    # fused head layer 2: block-diagonal into one lane-dense (2Hp, out_pad) matrix
    w_out = jnp.zeros((2 * Hp, out_pad), jnp.float32)
    w_out = w_out.at[:H, :A].set(params["w_a2"])
    w_out = w_out.at[Hp:Hp + H, A:A + 1].set(params["w_v2"])
    b_out = jnp.zeros((1, out_pad), jnp.float32)
    b_out = b_out.at[:, :A].set(params["b_a2"]).at[:, A:A + 1].set(params["b_v2"])

    b_all = jnp.concatenate(
        [padb(params["b_in"], Hp), padb(params["b_p1"], Hp), b_h1, b_out], axis=1)

    bf16 = lambda w: w.astype(jnp.bfloat16)
    return dict(w_in=bf16(w_in), w_p1=bf16(w_p1), w_h1=bf16(w_h1),
                w_out=bf16(w_out), b_all=b_all)


# ------------------------------------------------------------------------------ wrapper


def build_actor_critic(params, *, dim_input, dim_hidden, dim_action,
                       continuous_actions=False, max_batch_tile=2048):
    """Packs/pads weights once and returns a jitted forward(x) -> (logits, value)."""
    Hp = _round_up(dim_hidden, 128)          # lane-pad hidden dim
    OUTp = _round_up(dim_action + 1, 128)    # fused [logits|value] slab, lane-dense
    packed = pack_params(params, dim_input, dim_hidden, dim_action, Hp, OUTp)
    act_dtype = _gelu_compute_dtype()

    kernel = functools.partial(
        actor_critic_kernel,
        h_pad=Hp, out_pad=OUTp, dim_action=dim_action,
        idx_log_std=dim_action // 2, continuous_actions=continuous_actions,
        act_dtype=act_dtype)

    resident = lambda a: pl.BlockSpec(a.shape, lambda i: (0, 0))
    # TODO(synk): on v7x at very large dim_hidden, add pipeline_mode=pl.Buffered(1) on the
    # resident weight specs to halve their VMEM footprint (free at Hp=128, so omitted).

    @jax.jit
    def forward(x):
        if x.ndim == 3:                      # forward(): (b, n, d) -> (b, n*d)
            b, n, d = x.shape
            x = x.reshape(b, n * d)
        B, DI = x.shape
        assert DI == dim_input

        # Batch tiling: pad to 16, split into near-equal 16-aligned tiles (no 2x tail
        # over-padding), large tiles to amortize per-step overhead, >=2 steps once the
        # batch is big enough so the v7x megacore can shard the "parallel" axis.
        B16 = _round_up(B, 16)
        steps = _cdiv(B16, max_batch_tile)
        if B16 >= 256:
            steps = max(steps, 2)
        TB = _round_up(_cdiv(B16, steps), 16)
        B_pad = steps * TB

        xb = x.astype(jnp.bfloat16)
        if B_pad != B:
            xb = jnp.pad(xb, ((0, B_pad - B), (0, 0)))

        weight_elems = DI * Hp + Hp * Hp + Hp * 2 * Hp + 2 * Hp * OUTp
        cost = pl.CostEstimate(
            flops=2 * B_pad * weight_elems,
            transcendentals=4 * B_pad * Hp,                       # tanh per GELU element
            bytes_accessed=(B_pad * DI * 2 + B_pad * OUTp * 2
                            + weight_elems * 2 + (4 * Hp + OUTp) * 4),
        )

        out = pl.pallas_call(
            kernel,
            out_shape=jax.ShapeDtypeStruct((B_pad, OUTp), jnp.bfloat16),
            grid=(steps,),
            in_specs=[
                pl.BlockSpec((TB, DI), lambda i: (i, 0)),      # x tile streams over batch
                resident(packed["w_in"]),
                resident(packed["w_p1"]),
                resident(packed["w_h1"]),
                resident(packed["w_out"]),
                resident(packed["b_all"]),
            ],
            out_specs=pl.BlockSpec((TB, OUTp), lambda i: (i, 0)),
            compiler_params=pltpu.CompilerParams(
                dimension_semantics=("parallel",)),            # megacore-shardable batch axis
            cost_estimate=cost,
        )(xb, packed["w_in"], packed["w_p1"], packed["w_h1"],
          packed["w_out"], packed["b_all"])

        logits = out[:B, :dim_action].astype(jnp.float32)
        value = out[:B, dim_action].astype(jnp.float32)        # value_head(...).flatten()
        return logits, value

    return forward


# --------------------------------------------------------------------- pure-JAX reference


def actor_critic_reference(x, params, *, dim_action, continuous_actions=False):
    if x.ndim == 3:
        b, n, d = x.shape
        x = x.reshape(b, n * d)
    g = lambda t: jax.nn.gelu(t, approximate=False)        # exact erf GELU (== F.gelu)
    lin = lambda t, w, b: t @ params[w] + params[b]
    h = g(lin(x, "w_in", "b_in"))
    h = g(lin(h, "w_p1", "b_p1"))
    embd = lin(h, "w_p2", "b_p2")
    a = g(lin(embd, "w_a1", "b_a1"))
    logits = lin(a, "w_a2", "b_a2")
    v = g(lin(embd, "w_v1", "b_v1"))
    value = lin(v, "w_v2", "b_v2").reshape(-1)
    if continuous_actions:
        idx = dim_action // 2
        logits = logits.at[..., idx:].set(jnp.clip(logits[..., idx:], -1.0, 1.0))
    return logits, value


if __name__ == "__main__":
    key = jax.random.PRNGKey(0)
    k_x, k_p = jax.random.split(key)

    B, N, D = 2, 8, 4                    # x: (b, n, d) -> reshaped to (b, n*d)
    DIM_INPUT = N * D                    # 32
    DIM_HIDDEN = 32                      # pi._dim_hidden
    DIM_ACTION = 4

    x = jax.random.normal(k_x, (B, N, D), dtype=jnp.float32)
    params = init_params(k_p, DIM_INPUT, DIM_HIDDEN, DIM_ACTION)

    forward = build_actor_critic(
        params, dim_input=DIM_INPUT, dim_hidden=DIM_HIDDEN,
        dim_action=DIM_ACTION, continuous_actions=False)

    logits, value = forward(x)
    jax.block_until_ready(logits)
    jax.block_until_ready(value)

    assert logits.shape == (B, DIM_ACTION)
    assert value.shape == (B,)
    assert bool(jnp.all(jnp.isfinite(logits))) and bool(jnp.all(jnp.isfinite(value)))

    # correctness vs f32 / exact-GELU reference (bf16 matmuls + tanh-GELU in kernel)
    ref_logits, ref_value = actor_critic_reference(
        x, params, dim_action=DIM_ACTION, continuous_actions=False)
    assert jnp.allclose(logits, ref_logits, atol=1e-4, rtol=0.1)
    assert jnp.allclose(value, ref_value, atol=1e-4, rtol=0.1)

    print("KERNEL_OK")
</pallas_src>

<mosaic_0001>
module attributes {stable_mosaic.version = 11 : i64} {
  func.func @actor_critic_kernel(%arg0: i32, %arg1: memref<16x32xbf16, #tpu.memory_space<vmem>>, %arg2: memref<32x128xbf16, #tpu.memory_space<vmem>>, %arg3: memref<128x128xbf16, #tpu.memory_space<vmem>>, %arg4: memref<128x256xbf16, #tpu.memory_space<vmem>>, %arg5: memref<256x128xbf16, #tpu.memory_space<vmem>>, %arg6: memref<1x640xf32, #tpu.memory_space<vmem>>, %arg7: memref<16x128xbf16, #tpu.memory_space<vmem>>) attributes {dimension_semantics = [#tpu.dimension_semantics<parallel>], iteration_bounds = array<i64: 1>, scalar_prefetch = 0 : i64, scratch_operands = 0 : i64, tpu.core_type = #tpu.core_type<tc>, window_params = [{transform_indices = @transform_0, window_bounds = array<i64: 16, 32>}, {pipeline_mode = #tpu.pipeline_mode<synchronous>, transform_indices = @transform_1, window_bounds = array<i64: 32, 128>}, {pipeline_mode = #tpu.pipeline_mode<synchronous>, transform_indices = @transform_2, window_bounds = array<i64: 128, 128>}, {pipeline_mode = #tpu.pipeline_mode<synchronous>, transform_indices = @transform_3, window_bounds = array<i64: 128, 256>}, {pipeline_mode = #tpu.pipeline_mode<synchronous>, transform_indices = @transform_4, window_bounds = array<i64: 256, 128>}, {pipeline_mode = #tpu.pipeline_mode<synchronous>, transform_indices = @transform_5, window_bounds = array<i64: 1, 640>}, {transform_indices = @transform_6, window_bounds = array<i64: 16, 128>}]} {
    %c0 = arith.constant 0 : index
    %c0_0 = arith.constant 0 : index
    %0 = vector.load %arg6[%c0, %c0_0] : memref<1x640xf32, #tpu.memory_space<vmem>>, vector<1x128xf32>
    %c0_1 = arith.constant 0 : index
    %c128 = arith.constant 128 : index
    %1 = vector.load %arg6[%c0_1, %c128] : memref<1x640xf32, #tpu.memory_space<vmem>>, vector<1x128xf32>
    %c0_2 = arith.constant 0 : index
    %c256 = arith.constant 256 : index
    %2 = vector.load %arg6[%c0_2, %c256] : memref<1x640xf32, #tpu.memory_space<vmem>>, vector<1x256xf32>
    %c0_3 = arith.constant 0 : index
    %c512 = arith.constant 512 : index
    %3 = vector.load %arg6[%c0_3, %c512] : memref<1x640xf32, #tpu.memory_space<vmem>>, vector<1x128xf32>
    %c0_4 = arith.constant 0 : index
    %c0_5 = arith.constant 0 : index
    %4 = vector.load %arg1[%c0_4, %c0_5] : memref<16x32xbf16, #tpu.memory_space<vmem>>, vector<16x32xbf16>
    %c0_6 = arith.constant 0 : index
    %c0_7 = arith.constant 0 : index
    %5 = vector.load %arg2[%c0_6, %c0_7] : memref<32x128xbf16, #tpu.memory_space<vmem>>, vector<32x128xbf16>
    %cst = arith.constant dense<0.000000e+00> : vector<16x128xf32>
    %6 = tpu.matmul %4, %5, %cst {dimension_numbers = #tpu.dot_dimension_numbers<[1], [0], [0], [1], [0, 0, 1, 1], [], []>} : vector<16x32xbf16>, vector<32x128xbf16>, vector<16x128xf32> -> vector<16x128xf32>
    %7 = vector.broadcast %0 : vector<1x128xf32> to vector<16x128xf32>
    %8 = arith.addf %6, %7 : vector<16x128xf32>
    %9 = arith.truncf %8 : vector<16x128xf32> to vector<16x128xbf16>
    %cst_8 = arith.constant 5.000000e-01 : bf16
    %10 = vector.broadcast %cst_8 : bf16 to vector<16x128xbf16>
    %11 = arith.mulf %10, %9 : vector<16x128xbf16>
    %cst_9 = arith.constant 4.467770e-02 : bf16
    %12 = vector.broadcast %cst_9 : bf16 to vector<16x128xbf16>
    %13 = arith.mulf %12, %9 : vector<16x128xbf16>
    %14 = arith.mulf %13, %9 : vector<16x128xbf16>
    %15 = arith.mulf %14, %9 : vector<16x128xbf16>
    %16 = arith.addf %9, %15 : vector<16x128xbf16>
    %cst_10 = arith.constant 7.968750e-01 : bf16
    %17 = vector.broadcast %cst_10 : bf16 to vector<16x128xbf16>
    %18 = arith.mulf %17, %16 : vector<16x128xbf16>
    %19 = math.tanh %18 : vector<16x128xbf16>
    %cst_11 = arith.constant 1.000000e+00 : bf16
    %20 = vector.broadcast %cst_11 : bf16 to vector<16x128xbf16>
    %21 = arith.addf %20, %19 : vector<16x128xbf16>
    %22 = arith.mulf %11, %21 : vector<16x128xbf16>
    %c0_12 = arith.constant 0 : index
    %c0_13 = arith.constant 0 : index
    %23 = vector.load %arg3[%c0_12, %c0_13] : memref<128x128xbf16, #tpu.memory_space<vmem>>, vector<128x128xbf16>
    %cst_14 = arith.constant dense<0.000000e+00> : vector<16x128xf32>
    %24 = tpu.matmul %22, %23, %cst_14 {dimension_numbers = #tpu.dot_dimension_numbers<[1], [0], [0], [1], [0, 0, 1, 1], [], []>} : vector<16x128xbf16>, vector<128x128xbf16>, vector<16x128xf32> -> vector<16x128xf32>
    %25 = vector.broadcast %1 : vector<1x128xf32> to vector<16x128xf32>
    %26 = arith.addf %24, %25 : vector<16x128xf32>
    %27 = arith.truncf %26 : vector<16x128xf32> to vector<16x128xbf16>
    %cst_15 = arith.constant 5.000000e-01 : bf16
    %28 = vector.broadcast %cst_15 : bf16 to vector<16x128xbf16>
    %29 = arith.mulf %28, %27 : vector<16x128xbf16>
    %cst_16 = arith.constant 4.467770e-02 : bf16
    %30 = vector.broadcast %cst_16 : bf16 to vector<16x128xbf16>
    %31 = arith.mulf %30, %27 : vector<16x128xbf16>
    %32 = arith.mulf %31, %27 : vector<16x128xbf16>
    %33 = arith.mulf %32, %27 : vector<16x128xbf16>
    %34 = arith.addf %27, %33 : vector<16x128xbf16>
    %cst_17 = arith.constant 7.968750e-01 : bf16
    %35 = vector.broadcast %cst_17 : bf16 to vector<16x128xbf16>
    %36 = arith.mulf %35, %34 : vector<16x128xbf16>
    %37 = math.tanh %36 : vector<16x128xbf16>
    %cst_18 = arith.constant 1.000000e+00 : bf16
    %38 = vector.broadcast %cst_18 : bf16 to vector<16x128xbf16>
    %39 = arith.addf %38, %37 : vector<16x128xbf16>
    %40 = arith.mulf %29, %39 : vector<16x128xbf16>
    %c0_19 = arith.constant 0 : index
    %c0_20 = arith.constant 0 : index
    %41 = vector.load %arg4[%c0_19, %c0_20] : memref<128x256xbf16, #tpu.memory_space<vmem>>, vector<128x256xbf16>
    %cst_21 = arith.constant dense<0.000000e+00> : vector<16x256xf32>
    %42 = tpu.matmul %40, %41, %cst_21 {dimension_numbers = #tpu.dot_dimension_numbers<[1], [0], [0], [1], [0, 0, 1, 1], [], []>} : vector<16x128xbf16>, vector<128x256xbf16>, vector<16x256xf32> -> vector<16x256xf32>
    %43 = vector.broadcast %2 : vector<1x256xf32> to vector<16x256xf32>
    %44 = arith.addf %42, %43 : vector<16x256xf32>
    %45 = arith.truncf %44 : vector<16x256xf32> to vector<16x256xbf16>
    %cst_22 = arith.constant 5.000000e-01 : bf16
    %46 = vector.broadcast %cst_22 : bf16 to vector<16x256xbf16>
    %47 = arith.mulf %46, %45 : vector<16x256xbf16>
    %cst_23 = arith.constant 4.467770e-02 : bf16
    %48 = vector.broadcast %cst_23 : bf16 to vector<16x256xbf16>
    %49 = arith.mulf %48, %45 : vector<16x256xbf16>
    %50 = arith.mulf %49, %45 : vector<16x256xbf16>
    %51 = arith.mulf %50, %45 : vector<16x256xbf16>
    %52 = arith.addf %45, %51 : vector<16x256xbf16>
    %cst_24 = arith.constant 7.968750e-01 : bf16
    %53 = vector.broadcast %cst_24 : bf16 to vector<16x256xbf16>
    %54 = arith.mulf %53, %52 : vector<16x256xbf16>
    %55 = math.tanh %54 : vector<16x256xbf16>
    %cst_25 = arith.constant 1.000000e+00 : bf16
    %56 = vector.broadcast %cst_25 : bf16 to vector<16x256xbf16>
    %57 = arith.addf %56, %55 : vector<16x256xbf16>
    %58 = arith.mulf %47, %57 : vector<16x256xbf16>
    %c0_26 = arith.constant 0 : index
    %c0_27 = arith.constant 0 : index
    %59 = vector.load %arg5[%c0_26, %c0_27] : memref<256x128xbf16, #tpu.memory_space<vmem>>, vector<256x128xbf16>
    %cst_28 = arith.constant dense<0.000000e+00> : vector<16x128xf32>
    %60 = tpu.matmul %58, %59, %cst_28 {dimension_numbers = #tpu.dot_dimension_numbers<[1], [0], [0], [1], [0, 0, 1, 1], [], []>} : vector<16x256xbf16>, vector<256x128xbf16>, vector<16x128xf32> -> vector<16x128xf32>
    %61 = vector.broadcast %3 : vector<1x128xf32> to vector<16x128xf32>
    %62 = arith.addf %60, %61 : vector<16x128xf32>
    %63 = arith.truncf %62 : vector<16x128xf32> to vector<16x128xbf16>
    %c0_29 = arith.constant 0 : index
    %c0_30 = arith.constant 0 : index
    %64 = vector.load %arg7[%c0_29, %c0_30] : memref<16x128xbf16, #tpu.memory_space<vmem>>, vector<16x128xbf16>
    tpu.vector_store %arg7[%c0_29, %c0_30], %63 {strides = array<i32>} : memref<16x128xbf16, #tpu.memory_space<vmem>>, vector<16x128xbf16>,
    return
  }
  func.func @transform_0(%arg0: i32) -> (i32, i32) {
    %c0_i32 = arith.constant 0 : i32
    %c0_i32_0 = arith.constant 0 : i32
    return %arg0, %c0_i32 : i32, i32
  }
  func.func @transform_1(%arg0: i32) -> (i32, i32) {
    %c0_i32 = arith.constant 0 : i32
    %c0_i32_0 = arith.constant 0 : i32
    %c0_i32_1 = arith.constant 0 : i32
    return %c0_i32, %c0_i32_0 : i32, i32
  }
  func.func @transform_2(%arg0: i32) -> (i32, i32) {
    %c0_i32 = arith.constant 0 : i32
    %c0_i32_0 = arith.constant 0 : i32
    %c0_i32_1 = arith.constant 0 : i32
    return %c0_i32, %c0_i32_0 : i32, i32
  }
  func.func @transform_3(%arg0: i32) -> (i32, i32) {
    %c0_i32 = arith.constant 0 : i32
    %c0_i32_0 = arith.constant 0 : i32
    %c0_i32_1 = arith.constant 0 : i32
    return %c0_i32, %c0_i32_0 : i32, i32
  }
  func.func @transform_4(%arg0: i32) -> (i32, i32) {
    %c0_i32 = arith.constant 0 : i32
    %c0_i32_0 = arith.constant 0 : i32
    %c0_i32_1 = arith.constant 0 : i32
    return %c0_i32, %c0_i32_0 : i32, i32
  }
  func.func @transform_5(%arg0: i32) -> (i32, i32) {
    %c0_i32 = arith.constant 0 : i32
    %c0_i32_0 = arith.constant 0 : i32
    %c0_i32_1 = arith.constant 0 : i32
    return %c0_i32, %c0_i32_0 : i32, i32
  }
  func.func @transform_6(%arg0: i32) -> (i32, i32) {
    %c0_i32 = arith.constant 0 : i32
    %c0_i32_0 = arith.constant 0 : i32
    return %arg0, %c0_i32 : i32, i32
  }
}

</mosaic_0001>

<llo_original>
// kernel: forward.1
$region0: #{forward.1}
  #allocation0 [shape = 'u32[]', space=smem, size = 0x4, offset = 0x4, fixed_abs, tag = 'smem constant byte address 0x4 - core index']
  #allocation1 [shape = 'u32[144,128]{1,0:T(1,128)}', space=vmem, size = 0x12000, scoped, tag = 'internal scratch']
  %s0 = inlined_call_operand.vmem [shape: bf16[16,32], index: 0, kind: input, shape index: {}]
  %s1 = inlined_call_operand.vmem [shape: bf16[32,128], index: 1, kind: input, shape index: {}]
  %s2 = inlined_call_operand.vmem [shape: bf16[128,128], index: 2, kind: input, shape index: {}]
  %s3 = inlined_call_operand.vmem [shape: bf16[128,256], index: 3, kind: input, shape index: {}]
  %s4 = inlined_call_operand.vmem [shape: bf16[256,128], index: 4, kind: input, shape index: {}]
  %s5 = inlined_call_operand.vmem [shape: f32[1,640], index: 5, kind: input, shape index: {}]
  %s6 = inlined_call_operand.vmem [shape: bf16[16,128], index: 6, kind: output, shape index: {}]
  %s7 = sld [smem:[#allocation0]]
  $region34: #{forward.1} parent=0
    _
  %s9 = ssub.s32 1, %s7
  %s10 = scalar_select 0, %s9, %s7
  // Predicated region
  $region2: #{forward.1} parent=0 // pred_check
    _
  $region3: #{forward.1} parent=0 // pred_check_branch
    %12 = sbr.rel (0) target = $region5
  $region4: #{forward.1} parent=0 // pred_region
    _
  $region5: #{forward.1} parent=0 // pred_fallthru
    _
  // Predicated region
  $region6: #{forward.1} parent=0 // pred_check
    _
  $region7: #{forward.1} parent=0 // pred_check_branch
    %14 = sbr.rel (0) target = $region9
  $region8: #{forward.1} parent=0 // pred_region
    _
  $region9: #{forward.1} parent=0 // pred_fallthru
    _
  // Predicated region
  $region10: #{forward.1} parent=0 // pred_check
    _
  $region11: #{forward.1} parent=0 // pred_check_branch
    %16 = sbr.rel (0) target = $region13
  $region12: #{forward.1} parent=0 // pred_region
    _
  $region13: #{forward.1} parent=0 // pred_fallthru
    _
  // Predicated region
  $region14: #{forward.1} parent=0 // pred_check
    _
  $region15: #{forward.1} parent=0 // pred_check_branch
    %18 = sbr.rel (0) target = $region17
  $region16: #{forward.1} parent=0 // pred_region
    _
  $region17: #{forward.1} parent=0 // pred_fallthru
    _
  // Predicated region
  $region18: #{forward.1} parent=0 // pred_check
    _
  $region19: #{forward.1} parent=0 // pred_check_branch
    %20 = sbr.rel (0) target = $region21
  $region20: #{forward.1} parent=0 // pred_region
    _
  $region21: #{forward.1} parent=0 // pred_fallthru
    _
  // Predicated region
  $region22: #{forward.1} parent=0 // pred_check
    _
  $region23: #{forward.1} parent=0 // pred_check_branch
    %22 = sbr.rel (0) target = $region25
  $region24: #{forward.1} parent=0 // pred_region
    _
  $region25: #{forward.1} parent=0 // pred_fallthru
    _
  %v28 = vld [vmem:[%s5] sm:$0x1]
  %v29 = vld [vmem:[%s5 + $0x1] sm:$0x1]
  %v30 = vld [vmem:[%s5 + $0x2] sm:$0x3]
  %v31 = vld [vmem:[%s5 + $0x4] sm:$0x1]
  %v32 = vld [vmem:[%s0] sm:$0xf]
  %v33 = vld [vmem:[%s0 + $0x4] sm:$0xf]
  %v34 = vld [vmem:[%s1] sm:$0xf]
  %v35 = vld [vmem:[%s1 + $0x4] sm:$0xf]
  %v36 = vld [vmem:[%s1 + $0x8] sm:$0xf]
  %v37 = vld [vmem:[%s1 + $0xc] sm:$0xf]
  %v39 = vlaneseq
  %v40 = vshrl.u32 %v39, 7
  %v41 = vsub.s32 0, %v40
  %v42 = vrot.slane %v28, %v41
  %v46 = vunpack.c.l.b16 %v32
  %v47 = vunpack.c.l.b16 %v33
  %v48 = vpack.c.b16 %v47, %v46
  %v53 = vunpack.c.l.b16 %v34
  %v54 = vunpack.c.l.b16 %v35
  %v55 = vunpack.c.l.b16 %v36
  %v56 = vunpack.c.l.b16 %v37
  %v57 = vpack.c.b16 %v54, %v53
  %v58 = vpack.c.b16 %v56, %v55
  %vm61 = vcmask 261120
  %v63 = vsel %vm61, %v48, 0
  %65 = vmatprep.subr.bf16.mxu0 0
  %66 = vmatpush1.bf16.msra.mxu0 %v57
  %67 = vmatprep.subr.bf16.mxu0 0
  %68 = vmatpush1.bf16.msra.mxu0 %v58
  %69 = vmatprep.subr.bf16.mxu0 0
  %70 = vmatpush1.bf16.msra.mxu0 0
  %71 = vmatprep.subr.bf16.mxu0 0
  %72 = vmatpush1.bf16.msra.mxu0 0
  %73 = vmatprep.subr.bf16.mxu0 0
  %74 = vmatpush1.bf16.msra.mxu0 0
  %75 = vmatprep.subr.bf16.mxu0 0
  %76 = vmatpush1.bf16.msra.mxu0 0
  %77 = vmatprep.subr.bf16.mxu0 0
  %78 = vmatpush1.bf16.msra.mxu0 0
  %79 = vmatprep.subr.bf16.mxu0 0
  %80 = vmatpush1.bf16.msra.mxu0 0
  %81 = vmatprep.subr.bf16.mxu0 0
  %82 = vmatpush1.bf16.msra.mxu0 0
  %83 = vmatprep.subr.bf16.mxu0 0
  %84 = vmatpush1.bf16.msra.mxu0 0
  %85 = vmatprep.subr.bf16.mxu0 0
  %86 = vmatpush1.bf16.msra.mxu0 0
  %87 = vmatprep.subr.bf16.mxu0 0
  %88 = vmatpush1.bf16.msra.mxu0 0
  %89 = vmatprep.subr.bf16.mxu0 0
  %90 = vmatpush1.bf16.msra.mxu0 0
  %91 = vmatprep.subr.bf16.mxu0 0
  %92 = vmatpush1.bf16.msra.mxu0 0
  %93 = vmatprep.subr.bf16.mxu0 0
  %94 = vmatpush1.bf16.msra.mxu0 0
  %95 = vmatprep.subr.bf16.mxu0 0
  %96 = vmatpush1.bf16.msra.mxu0 0
  %97 = vmatprep.mubr.bf16.mxu0 0
  %98 = vmatmul.mubr.bf16.gmra.mrb[0].mxu0 %v63
  %v99 = vpop.f32.mrb[0].mxu0
  %v100 = vadd.f32 %v42, %v99
  %v101 = vpop.f32.mrb[0].mxu0
  %v102 = vpop.f32.mrb[0].mxu0
  %v103 = vadd.f32 %v42, %v102
  %v104 = vpop.f32.mrb[0].mxu0
  %105 = vdwg.mxu0
  %v106 = vpack.c.bf16 %v103, %v100
  %v107 = vmul.bf16 %v106, 1056980736
  %v108 = vmul.bf16 %v106, 1027030327
  %v109 = vmul.bf16 %v108, %v106
  %v110 = vmul.bf16 %v109, %v106
  %v111 = vadd.bf16 %v106, %v110
  %v112 = vmul.bf16 %v111, 1061961548
  %v113 = vtanh.bf16.pop %v112
  %v114 = vadd.bf16 %v113, 1065369472
  %v115 = vmul.bf16 %v107, %v114
  %v116 = vld [vmem:[%s2] sm:$0xf]
  %v117 = vld [vmem:[%s2 + $0x4] sm:$0xf]
  %v118 = vld [vmem:[%s2 + $0x8] sm:$0xf]
  %v119 = vld [vmem:[%s2 + $0xc] sm:$0xf]
  %v120 = vld [vmem:[%s2 + $0x10] sm:$0xf]
  %v121 = vld [vmem:[%s2 + $0x14] sm:$0xf]
  %v122 = vld [vmem:[%s2 + $0x18] sm:$0xf]
  %v123 = vld [vmem:[%s2 + $0x1c] sm:$0xf]
  %v124 = vld [vmem:[%s2 + $0x20] sm:$0xf]
  %v125 = vld [vmem:[%s2 + $0x24] sm:$0xf]
  %v126 = vld [vmem:[%s2 + $0x28] sm:$0xf]
  %v127 = vld [vmem:[%s2 + $0x2c] sm:$0xf]
  %v128 = vld [vmem:[%s2 + $0x30] sm:$0xf]
  %v129 = vld [vmem:[%s2 + $0x34] sm:$0xf]
  %v130 = vld [vmem:[%s2 + $0x38] sm:$0xf]
  %v131 = vld [vmem:[%s2 + $0x3c] sm:$0xf]
  %v133 = vlaneseq
  %v134 = vshrl.u32 %v133, 7
  %v135 = vsub.s32 0, %v134
  %v136 = vrot.slane %v29, %v135
  %v154 = vunpack.c.l.b16 %v116
  %v155 = vunpack.c.l.b16 %v117
  %v156 = vunpack.c.l.b16 %v118
  %v157 = vunpack.c.l.b16 %v119
  %v158 = vunpack.c.l.b16 %v120
  %v159 = vunpack.c.l.b16 %v121
  %v160 = vunpack.c.l.b16 %v122
  %v161 = vunpack.c.l.b16 %v123
  %v162 = vunpack.c.l.b16 %v124
  %v163 = vunpack.c.l.b16 %v125
  %v164 = vunpack.c.l.b16 %v126
  %v165 = vunpack.c.l.b16 %v127
  %v166 = vunpack.c.l.b16 %v128
  %v167 = vunpack.c.l.b16 %v129
  %v168 = vunpack.c.l.b16 %v130
  %v169 = vunpack.c.l.b16 %v131
  %v170 = vpack.c.b16 %v155, %v154
  %v171 = vpack.c.b16 %v157, %v156
  %v172 = vpack.c.b16 %v159, %v158
  %v173 = vpack.c.b16 %v161, %v160
  %v174 = vpack.c.b16 %v163, %v162
  %v175 = vpack.c.b16 %v165, %v164
  %v176 = vpack.c.b16 %v167, %v166
  %v177 = vpack.c.b16 %v169, %v168
  %186 = vmatprep.subr.bf16.mxu0 0
  %187 = vmatpush1.bf16.msra.mxu0 %v170
  %188 = vmatprep.subr.bf16.mxu0 0
  %189 = vmatpush1.bf16.msra.mxu0 %v171
  %190 = vmatprep.subr.bf16.mxu0 0
  %191 = vmatpush1.bf16.msra.mxu0 %v172
  %192 = vmatprep.subr.bf16.mxu0 0
  %193 = vmatpush1.bf16.msra.mxu0 %v173
  %194 = vmatprep.subr.bf16.mxu0 0
  %195 = vmatpush1.bf16.msra.mxu0 %v174
  %196 = vmatprep.subr.bf16.mxu0 0
  %197 = vmatpush1.bf16.msra.mxu0 %v175
  %198 = vmatprep.subr.bf16.mxu0 0
  %199 = vmatpush1.bf16.msra.mxu0 %v176
  %200 = vmatprep.subr.bf16.mxu0 0
  %201 = vmatpush1.bf16.msra.mxu0 %v177
  %202 = vmatprep.subr.bf16.mxu0 0
  %203 = vmatpush1.bf16.msra.mxu0 0
  %204 = vmatprep.subr.bf16.mxu0 0
  %205 = vmatpush1.bf16.msra.mxu0 0
  %206 = vmatprep.subr.bf16.mxu0 0
  %207 = vmatpush1.bf16.msra.mxu0 0
  %208 = vmatprep.subr.bf16.mxu0 0
  %209 = vmatpush1.bf16.msra.mxu0 0
  %210 = vmatprep.subr.bf16.mxu0 0
  %211 = vmatpush1.bf16.msra.mxu0 0
  %212 = vmatprep.subr.bf16.mxu0 0
  %213 = vmatpush1.bf16.msra.mxu0 0
  %214 = vmatprep.subr.bf16.mxu0 0
  %215 = vmatpush1.bf16.msra.mxu0 0
  %216 = vmatprep.subr.bf16.mxu0 0
  %217 = vmatpush1.bf16.msra.mxu0 0
  %218 = vmatprep.mubr.bf16.mxu0 0
  %219 = vmatmul.mubr.bf16.gmra.mrb[0].mxu0 %v115
  %v220 = vpop.f32.mrb[0].mxu0
  %v221 = vadd.f32 %v136, %v220
  %v222 = vpop.f32.mrb[0].mxu0
  %v223 = vpop.f32.mrb[0].mxu0
  %v224 = vadd.f32 %v136, %v223
  %v225 = vpop.f32.mrb[0].mxu0
  %226 = vdwg.mxu0
  %v227 = vpack.c.bf16 %v224, %v221
  %v228 = vmul.bf16 %v227, 1056980736
  %v229 = vmul.bf16 %v227, 1027030327
  %v230 = vmul.bf16 %v229, %v227
  %v231 = vmul.bf16 %v230, %v227
  %v232 = vadd.bf16 %v227, %v231
  %v233 = vmul.bf16 %v232, 1061961548
  %v234 = vtanh.bf16.pop %v233
  %v235 = vadd.bf16 %v234, 1065369472
  %v236 = vmul.bf16 %v228, %v235
  %v237 = vld [vmem:[%s3] sm:$0xff]
  %v238 = vld [vmem:[%s3 + $0x8] sm:$0xff]
  %v239 = vld [vmem:[%s3 + $0x10] sm:$0xff]
  %v240 = vld [vmem:[%s3 + $0x18] sm:$0xff]
  %v241 = vld [vmem:[%s3 + $0x20] sm:$0xff]
  %v242 = vld [vmem:[%s3 + $0x28] sm:$0xff]
  %v243 = vld [vmem:[%s3 + $0x30] sm:$0xff]
  %v244 = vld [vmem:[%s3 + $0x38] sm:$0xff]
  %v245 = vld [vmem:[%s3 + $0x40] sm:$0xff]
  %v246 = vld [vmem:[%s3 + $0x48] sm:$0xff]
  %v247 = vld [vmem:[%s3 + $0x50] sm:$0xff]
  %v248 = vld [vmem:[%s3 + $0x58] sm:$0xff]
  %v249 = vld [vmem:[%s3 + $0x60] sm:$0xff]
  %v250 = vld [vmem:[%s3 + $0x68] sm:$0xff]
  %v251 = vld [vmem:[%s3 + $0x70] sm:$0xff]
  %v252 = vld [vmem:[%s3 + $0x78] sm:$0xff]
  %v254 = vlaneseq
  %v255 = vshrl.u32 %v254, 7
  %v256 = vsub.s32 0, %v255
  %v257 = vrot.slane %v30, %v256
  %v258 = vlaneseq
  %v259 = vshrl.u32 %v258, 7
  %v260 = vsub.s32 1, %v259
  %v261 = vrot.slane %v30, %v260
  %v280 = vunpack.c.l.b16 %v237
  %v281 = vunpack.c.h.b16 %v237
  %v282 = vunpack.c.l.b16 %v238
  %v283 = vunpack.c.h.b16 %v238
  %v284 = vunpack.c.l.b16 %v239
  %v285 = vunpack.c.h.b16 %v239
  %v286 = vunpack.c.l.b16 %v240
  %v287 = vunpack.c.h.b16 %v240
  %v288 = vunpack.c.l.b16 %v241
  %v289 = vunpack.c.h.b16 %v241
  %v290 = vunpack.c.l.b16 %v242
  %v291 = vunpack.c.h.b16 %v242
  %v292 = vunpack.c.l.b16 %v243
  %v293 = vunpack.c.h.b16 %v243
  %v294 = vunpack.c.l.b16 %v244
  %v295 = vunpack.c.h.b16 %v244
  %v296 = vunpack.c.l.b16 %v245
  %v297 = vunpack.c.h.b16 %v245
  %v298 = vunpack.c.l.b16 %v246
  %v299 = vunpack.c.h.b16 %v246
  %v300 = vunpack.c.l.b16 %v247
  %v301 = vunpack.c.h.b16 %v247
  %v302 = vunpack.c.l.b16 %v248
  %v303 = vunpack.c.h.b16 %v248
  %v304 = vunpack.c.l.b16 %v249
  %v305 = vunpack.c.h.b16 %v249
  %v306 = vunpack.c.l.b16 %v250
  %v307 = vunpack.c.h.b16 %v250
  %v308 = vunpack.c.l.b16 %v251
  %v309 = vunpack.c.h.b16 %v251
  %v310 = vunpack.c.l.b16 %v252
  %v311 = vunpack.c.h.b16 %v252
  %v312 = vpack.c.b16 %v282, %v280
  %v313 = vpack.c.b16 %v283, %v281
  %v314 = vpack.c.b16 %v286, %v284
  %v315 = vpack.c.b16 %v287, %v285
  %v316 = vpack.c.b16 %v290, %v288
  %v317 = vpack.c.b16 %v291, %v289
  %v318 = vpack.c.b16 %v294, %v292
  %v319 = vpack.c.b16 %v295, %v293
  %v320 = vpack.c.b16 %v298, %v296
  %v321 = vpack.c.b16 %v299, %v297
  %v322 = vpack.c.b16 %v302, %v300
  %v323 = vpack.c.b16 %v303, %v301
  %v324 = vpack.c.b16 %v306, %v304
  %v325 = vpack.c.b16 %v307, %v305
  %v326 = vpack.c.b16 %v310, %v308
  %v327 = vpack.c.b16 %v311, %v309
  %344 = vmatprep.subr.bf16.mxu0 %v313
  %345 = vmatpush1.bf16.msra.mxu0 %v312
  %346 = vmatprep.subr.bf16.mxu0 %v315
  %347 = vmatpush1.bf16.msra.mxu0 %v314
  %348 = vmatprep.subr.bf16.mxu0 %v317
  %349 = vmatpush1.bf16.msra.mxu0 %v316
  %350 = vmatprep.subr.bf16.mxu0 %v319
  %351 = vmatpush1.bf16.msra.mxu0 %v318
  %352 = vmatprep.subr.bf16.mxu0 %v321
  %353 = vmatpush1.bf16.msra.mxu0 %v320
  %354 = vmatprep.subr.bf16.mxu0 %v323
  %355 = vmatpush1.bf16.msra.mxu0 %v322
  %356 = vmatprep.subr.bf16.mxu0 %v325
  %357 = vmatpush1.bf16.msra.mxu0 %v324
  %358 = vmatprep.subr.bf16.mxu0 %v327
  %359 = vmatpush1.bf16.msra.mxu0 %v326
  %360 = vmatprep.subr.bf16.mxu0 0
  %361 = vmatpush1.bf16.msra.mxu0 0
  %362 = vmatprep.subr.bf16.mxu0 0
  %363 = vmatpush1.bf16.msra.mxu0 0
  %364 = vmatprep.subr.bf16.mxu0 0
  %365 = vmatpush1.bf16.msra.mxu0 0
  %366 = vmatprep.subr.bf16.mxu0 0
  %367 = vmatpush1.bf16.msra.mxu0 0
  %368 = vmatprep.subr.bf16.mxu0 0
  %369 = vmatpush1.bf16.msra.mxu0 0
  %370 = vmatprep.subr.bf16.mxu0 0
  %371 = vmatpush1.bf16.msra.mxu0 0
  %372 = vmatprep.subr.bf16.mxu0 0
  %373 = vmatpush1.bf16.msra.mxu0 0
  %374 = vmatprep.subr.bf16.mxu0 0
  %375 = vmatpush1.bf16.msra.mxu0 0
  %376 = vmatprep.mubr.bf16.mxu0 0
  %377 = vmatmul.mubr.bf16.gmra.mrb[0].mxu0 %v236
  %v378 = vpop.f32.mrb[0].mxu0
  %v379 = vadd.f32 %v257, %v378
  %v380 = vpop.f32.mrb[0].mxu0
  %v381 = vadd.f32 %v261, %v380
  %v382 = vpop.f32.mrb[0].mxu0
  %v383 = vadd.f32 %v257, %v382
  %v384 = vpop.f32.mrb[0].mxu0
  %v385 = vadd.f32 %v261, %v384
  %386 = vdwg.mxu0
  %v387 = vpack.c.bf16 %v383, %v379
  %v388 = vpack.c.bf16 %v385, %v381
  %v389 = vmul.bf16 %v387, 1056980736
  %v390 = vmul.bf16 %v388, 1056980736
  %v391 = vmul.bf16 %v387, 1027030327
  %v392 = vmul.bf16 %v388, 1027030327
  %v393 = vmul.bf16 %v391, %v387
  %v394 = vmul.bf16 %v392, %v388
  %v395 = vmul.bf16 %v393, %v387
  %v396 = vmul.bf16 %v394, %v388
  %v397 = vadd.bf16 %v387, %v395
  %v398 = vadd.bf16 %v388, %v396
  %v399 = vmul.bf16 %v397, 1061961548
  %v400 = vmul.bf16 %v398, 1061961548
  %v401 = vtanh.bf16.pop %v399
  %v402 = vtanh.bf16.pop %v400
  %v403 = vadd.bf16 %v401, 1065369472
  %v404 = vadd.bf16 %v402, 1065369472
  %v405 = vmul.bf16 %v389, %v403
  %v406 = vmul.bf16 %v390, %v404
  %v407 = vld [vmem:[%s4] sm:$0xf]
  %v408 = vld [vmem:[%s4 + $0x4] sm:$0xf]
  %v409 = vld [vmem:[%s4 + $0x8] sm:$0xf]
  %v410 = vld [vmem:[%s4 + $0xc] sm:$0xf]
  %v411 = vld [vmem:[%s4 + $0x10] sm:$0xf]
  %v412 = vld [vmem:[%s4 + $0x14] sm:$0xf]
  %v413 = vld [vmem:[%s4 + $0x18] sm:$0xf]
  %v414 = vld [vmem:[%s4 + $0x1c] sm:$0xf]
  %v415 = vld [vmem:[%s4 + $0x20] sm:$0xf]
  %v416 = vld [vmem:[%s4 + $0x24] sm:$0xf]
  %v417 = vld [vmem:[%s4 + $0x28] sm:$0xf]
  %v418 = vld [vmem:[%s4 + $0x2c] sm:$0xf]
  %v419 = vld [vmem:[%s4 + $0x30] sm:$0xf]
  %v420 = vld [vmem:[%s4 + $0x34] sm:$0xf]
  %v421 = vld [vmem:[%s4 + $0x38] sm:$0xf]
  %v422 = vld [vmem:[%s4 + $0x3c] sm:$0xf]
  %v423 = vld [vmem:[%s4 + $0x40] sm:$0xf]
  %v424 = vld [vmem:[%s4 + $0x44] sm:$0xf]
  %v425 = vld [vmem:[%s4 + $0x48] sm:$0xf]
  %v426 = vld [vmem:[%s4 + $0x4c] sm:$0xf]
  %v427 = vld [vmem:[%s4 + $0x50] sm:$0xf]
  %v428 = vld [vmem:[%s4 + $0x54] sm:$0xf]
  %v429 = vld [vmem:[%s4 + $0x58] sm:$0xf]
  %v430 = vld [vmem:[%s4 + $0x5c] sm:$0xf]
  %v431 = vld [vmem:[%s4 + $0x60] sm:$0xf]
  %v432 = vld [vmem:[%s4 + $0x64] sm:$0xf]
  %v433 = vld [vmem:[%s4 + $0x68] sm:$0xf]
  %v434 = vld [vmem:[%s4 + $0x6c] sm:$0xf]
  %v435 = vld [vmem:[%s4 + $0x70] sm:$0xf]
  %v436 = vld [vmem:[%s4 + $0x74] sm:$0xf]
  %v437 = vld [vmem:[%s4 + $0x78] sm:$0xf]
  %v438 = vld [vmem:[%s4 + $0x7c] sm:$0xf]
  %v440 = vlaneseq
  %v441 = vshrl.u32 %v440, 7
  %v442 = vsub.s32 0, %v441
  %v443 = vrot.slane %v31, %v442
  %v477 = vunpack.c.l.b16 %v407
  %v478 = vunpack.c.l.b16 %v408
  %v479 = vunpack.c.l.b16 %v409
  %v480 = vunpack.c.l.b16 %v410
  %v481 = vunpack.c.l.b16 %v411
  %v482 = vunpack.c.l.b16 %v412
  %v483 = vunpack.c.l.b16 %v413
  %v484 = vunpack.c.l.b16 %v414
  %v485 = vunpack.c.l.b16 %v415
  %v486 = vunpack.c.l.b16 %v416
  %v487 = vunpack.c.l.b16 %v417
  %v488 = vunpack.c.l.b16 %v418
  %v489 = vunpack.c.l.b16 %v419
  %v490 = vunpack.c.l.b16 %v420
  %v491 = vunpack.c.l.b16 %v421
  %v492 = vunpack.c.l.b16 %v422
  %v493 = vunpack.c.l.b16 %v423
  %v494 = vunpack.c.l.b16 %v424
  %v495 = vunpack.c.l.b16 %v425
  %v496 = vunpack.c.l.b16 %v426
  %v497 = vunpack.c.l.b16 %v427
  %v498 = vunpack.c.l.b16 %v428
  %v499 = vunpack.c.l.b16 %v429
  %v500 = vunpack.c.l.b16 %v430
  %v501 = vunpack.c.l.b16 %v431
  %v502 = vunpack.c.l.b16 %v432
  %v503 = vunpack.c.l.b16 %v433
  %v504 = vunpack.c.l.b16 %v434
  %v505 = vunpack.c.l.b16 %v435
  %v506 = vunpack.c.l.b16 %v436
  %v507 = vunpack.c.l.b16 %v437
  %v508 = vunpack.c.l.b16 %v438
  %v509 = vpack.c.b16 %v478, %v477
  %v510 = vpack.c.b16 %v480, %v479
  %v511 = vpack.c.b16 %v482, %v481
  %v512 = vpack.c.b16 %v484, %v483
  %v513 = vpack.c.b16 %v486, %v485
  %v514 = vpack.c.b16 %v488, %v487
  %v515 = vpack.c.b16 %v490, %v489
  %v516 = vpack.c.b16 %v492, %v491
  %v517 = vpack.c.b16 %v494, %v493
  %v518 = vpack.c.b16 %v496, %v495
  %v519 = vpack.c.b16 %v498, %v497
  %v520 = vpack.c.b16 %v500, %v499
  %v521 = vpack.c.b16 %v502, %v501
  %v522 = vpack.c.b16 %v504, %v503
  %v523 = vpack.c.b16 %v506, %v505
  %v524 = vpack.c.b16 %v508, %v507
  %541 = vmatprep.subr.bf16.mxu0 0
  %542 = vmatpush1.bf16.msra.mxu0 %v509
  %543 = vmatprep.subr.bf16.mxu0 0
  %544 = vmatpush1.bf16.msra.mxu0 %v510
  %545 = vmatprep.subr.bf16.mxu0 0
  %546 = vmatpush1.bf16.msra.mxu0 %v511
  %547 = vmatprep.subr.bf16.mxu0 0
  %548 = vmatpush1.bf16.msra.mxu0 %v512
  %549 = vmatprep.subr.bf16.mxu0 0
  %550 = vmatpush1.bf16.msra.mxu0 %v513
  %551 = vmatprep.subr.bf16.mxu0 0
  %552 = vmatpush1.bf16.msra.mxu0 %v514
  %553 = vmatprep.subr.bf16.mxu0 0
  %554 = vmatpush1.bf16.msra.mxu0 %v515
  %555 = vmatprep.subr.bf16.mxu0 0
  %556 = vmatpush1.bf16.msra.mxu0 %v516
  %557 = vmatprep.subr.bf16.mxu0 0
  %558 = vmatpush1.bf16.msra.mxu0 %v517
  %559 = vmatprep.subr.bf16.mxu0 0
  %560 = vmatpush1.bf16.msra.mxu0 %v518
  %561 = vmatprep.subr.bf16.mxu0 0
  %562 = vmatpush1.bf16.msra.mxu0 %v519
  %563 = vmatprep.subr.bf16.mxu0 0
  %564 = vmatpush1.bf16.msra.mxu0 %v520
  %565 = vmatprep.subr.bf16.mxu0 0
  %566 = vmatpush1.bf16.msra.mxu0 %v521
  %567 = vmatprep.subr.bf16.mxu0 0
  %568 = vmatpush1.bf16.msra.mxu0 %v522
  %569 = vmatprep.subr.bf16.mxu0 0
  %570 = vmatpush1.bf16.msra.mxu0 %v523
  %571 = vmatprep.subr.bf16.mxu0 0
  %572 = vmatpush1.bf16.msra.mxu0 %v524
  %573 = vmatprep.mubr.bf16.mxu0 %v406
  %574 = vmatmul.mubr.bf16.gmra.mrb[0].mxu0 %v405
  %v575 = vpop.f32.mrb[0].mxu0
  %v576 = vadd.f32 %v443, %v575
  %v577 = vpop.f32.mrb[0].mxu0
  %v578 = vpop.f32.mrb[0].mxu0
  %v579 = vadd.f32 %v443, %v578
  %v580 = vpop.f32.mrb[0].mxu0
  %581 = vdwg.mxu0
  %v582 = vpack.c.bf16 %v579, %v576
  %v584 = vunpack.c.l.b16 %v582
  %v585 = vunpack.c.h.b16 %v582
  %v586 = vpack.c.b16 %v584, %v584
  %v587 = vpack.c.b16 %v585, %v585
  %590 = vst [vmem:[%s6] sm:$0xf] %v586
  %591 = vst [vmem:[%s6 + $0x4] sm:$0xf] %v587
  // Predicated region
  $region26: #{forward.1} parent=0 // pred_check
    _
  $region27: #{forward.1} parent=0 // pred_check_branch
    %593 = sbr.rel (0) target = $region29
  $region28: #{forward.1} parent=0 // pred_region
    _
  $region29: #{forward.1} parent=0 // pred_fallthru
    _
  // Predicated region
  $region30: #{forward.1} parent=0 // pred_check
    _
  $region31: #{forward.1} parent=0 // pred_check_branch
    %595 = sbr.rel (0) target = $region33
  $region32: #{forward.1} parent=0 // pred_region
    _
  $region33: #{forward.1} parent=0 // pred_fallthru
    _

</llo_original>
